<compile_context>
chip_gen: v7x
topology: tpu7x:2x2x1
jax: 0.10.0
libtpu: 0.0.40
codegen_flags: <defaults>
</compile_context>

<pallas_src>
import jax
import jax.numpy as jnp
from jax.experimental import pallas as pl
from jax.experimental.pallas import tpu as pltpu


def _round_up(a, m):
    return ((a + m - 1) // m) * m


def attn_pool_kernel(x_ref, batch_ref, w1_ref, b1_ref, w2_ref, pooled_ref,
                     m_scr, l_scr, acc_scr):
    # x_ref:      [TN, F]   node-tile embeddings (streamed in native dtype)
    # batch_ref:  [1, TN]   graph id per node (padded nodes carry id == B)
    # w1_ref:     [F, H]    gate hidden weight (x.dtype), b1_ref: [1, H] f32
    # w2_ref:     [1, H]    gate output weight as a row (VPU path); b2 dropped
    # pooled_ref: [B, F]    attention-pooled graph embeddings (f32, resident)
    # scratch:    m_scr/l_scr [B,1] running max / denom, acc_scr [B,F] sum
    t = pl.program_id(0)
    B = pooled_ref.shape[0]

    @pl.when(t == 0)
    def _():
        m_scr[...] = jnp.full_like(m_scr, -1e30)
        l_scr[...] = jnp.zeros_like(l_scr)
        acc_scr[...] = jnp.zeros_like(acc_scr)

    x = x_ref[...]                                             # [TN, F] native dtype

    # ---- gate MLP: Linear(F,H) -> ReLU (MXU+VPU), Linear(H,1) on VPU ----
    h = jnp.dot(x, w1_ref[...], preferred_element_type=jnp.float32) + b1_ref[...]
    h = jnp.maximum(h, 0.0)                                    # [TN, H] f32
    gate_col = jnp.sum(h * w2_ref[...], axis=-1, keepdims=True)    # [TN, 1]
    gate_row = jnp.transpose(gate_col, (1, 0))                     # [1, TN] (tiny XLU relayout)

    # ---- online segment softmax in [B, TN] layout (nodes on lanes) ----
    ids = batch_ref[...]                                           # [1, TN] int32
    graph_iota = jax.lax.broadcasted_iota(jnp.int32, (B, ids.shape[1]), 0)
    mask = ids == graph_iota                                       # [B, TN]

    neg = jnp.float32(-1e30)
    m_tile = jnp.max(jnp.where(mask, gate_row, neg), axis=-1, keepdims=True)  # [B,1]
    m_prev = m_scr[...]                                            # [B, 1]
    m_new = jnp.maximum(m_prev, m_tile)                            # [B, 1]
    alpha = jnp.exp(m_prev - m_new)                                # [B, 1]

    # EUP-cheap factorization: exp over [1,TN] + [B,1] instead of [B,TN].
    # tile_max is subtracted first so e_row <= 1; the scale exponent is
    # clamped so no Inf/NaN is ever produced (empty-graph rows included).
    tile_max = jnp.max(gate_row, axis=-1, keepdims=True)           # [1, 1]
    e_row = jnp.exp(gate_row - tile_max)                           # [1, TN]
    scale = jnp.exp(jnp.minimum(tile_max - m_new, jnp.float32(80.0)))  # [B, 1]
    p = jnp.where(mask, e_row * scale, 0.0)                        # [B, TN]

    l_scr[...] = alpha * l_scr[...] + jnp.sum(p, axis=-1, keepdims=True)
    acc_scr[...] = alpha * acc_scr[...] + jnp.dot(
        p.astype(x.dtype), x, preferred_element_type=jnp.float32)  # [B, F] MXU
    m_scr[...] = m_new

    # ---- finalize: normalize (empty-graph guard -> pooled = 0) ----
    @pl.when(t == pl.num_programs(0) - 1)
    def _():
        denom = jnp.maximum(l_scr[...], jnp.float32(1e-30))
        pooled_ref[...] = (acc_scr[...] *
                           pl.reciprocal(denom, approx=False)).astype(pooled_ref.dtype)


def transform_kernel(pooled_ref, wt_ref, bt_ref, out_ref):
    # pooled_ref: [B, F], wt_ref: [F, PD_pad], bt_ref: [1, PD_pad]
    # out_ref:    [B, PD_pad] lane-dense flat prefix
    out_ref[...] = (jnp.dot(pooled_ref[...], wt_ref[...],
                            preferred_element_type=jnp.float32)
                    + bt_ref[...]).astype(out_ref.dtype)


def prefix_encoder(x, batch, params, num_graphs, prefix_length, prefix_dim):
    """x: [N, F] float32/bfloat16; batch: [N] int32 graph ids in [0, num_graphs)."""
    N, F = x.shape
    w1, b1, w2, b2, wt, bt = params   # b2 unused: segment softmax is shift-invariant
    H = w1.shape[1]
    PD = prefix_length * prefix_dim
    PD_pad = _round_up(PD, 128)

    # ---- node tiling: large tiles, avoid padding copies when possible ----
    if N <= 2048:
        TN = _round_up(N, 8)
    else:
        TN = next((c for c in (2048, 1024, 512) if N % c == 0), 512)
    N_pad = _round_up(N, TN)
    num_tiles = N_pad // TN

    if N_pad == N:
        # No extra HBM read+write of x before the kernel.
        x_p = x
        batch_p = batch.astype(jnp.int32).reshape(1, N)
    else:
        # Only the ragged remainder is padded (out-of-range graph id masks it).
        x_p = jnp.concatenate([x, jnp.zeros((N_pad - N, F), x.dtype)], axis=0)
        batch_p = jnp.concatenate(
            [batch.astype(jnp.int32),
             jnp.full((N_pad - N,), num_graphs, jnp.int32)]).reshape(1, N_pad)

    # Gate params in kernel layout; matmul operand w1 matches x's dtype so a
    # bf16 stream runs the MXU at its native bf16 rate.
    w1_k = w1.astype(x.dtype)
    b1_row = b1.reshape(1, H).astype(jnp.float32)
    w2_row = w2.reshape(1, H).astype(jnp.float32)

    # Explicit scoped-VMEM budget from the actual tile footprint (headroom on v7x).
    est = (2 * TN * F * x_p.dtype.itemsize          # x tile, double-buffered
           + 2 * TN * 4                             # batch id tile
           + 2 * (F * H * w1_k.dtype.itemsize + 2 * H * 4)   # gate params
           + num_graphs * (F + 2) * 4               # scratch m/l/acc
           + num_graphs * F * 4)                    # resident pooled output
    vmem_limit = int(min(48 << 20, max(8 << 20, 2 * est)))

    pooled = pl.pallas_call(
        attn_pool_kernel,
        out_shape=jax.ShapeDtypeStruct((num_graphs, F), jnp.float32),
        grid_spec=pltpu.PrefetchScalarGridSpec(
            num_scalar_prefetch=0,
            grid=(num_tiles,),
            in_specs=[
                pl.BlockSpec((TN, F), lambda i: (i, 0)),      # x tile (streamed)
                pl.BlockSpec((1, TN), lambda i: (0, i)),      # batch ids tile
                pl.BlockSpec((F, H), lambda i: (0, 0)),       # w1 (resident, small)
                pl.BlockSpec((1, H), lambda i: (0, 0)),       # b1
                pl.BlockSpec((1, H), lambda i: (0, 0)),       # w2 row
            ],
            out_specs=pl.BlockSpec((num_graphs, F), lambda i: (0, 0)),
            scratch_shapes=[
                pltpu.VMEM((num_graphs, 1), jnp.float32),     # running max
                pltpu.VMEM((num_graphs, 1), jnp.float32),     # running denom
                pltpu.VMEM((num_graphs, F), jnp.float32),     # running weighted sum
            ],
        ),
        compiler_params=pltpu.CompilerParams(
            dimension_semantics=("arbitrary",),               # node axis = reduction
            vmem_limit_bytes=vmem_limit),
    )(x_p, batch_p, w1_k, b1_row, w2_row)

    # ---- stage 2: prefix = pooled @ wt + bt (lane-dense padded output) ----
    if PD_pad == PD:
        wt_p = wt
        bt_p = bt.reshape(1, PD)
    else:
        wt_p = jnp.zeros((F, PD_pad), wt.dtype).at[:, :PD].set(wt)
        bt_p = jnp.zeros((1, PD_pad), bt.dtype).at[:, :PD].set(bt.reshape(1, PD))

    prefix_flat = pl.pallas_call(
        transform_kernel,
        out_shape=jax.ShapeDtypeStruct((num_graphs, PD_pad), jnp.float32),
        grid=(1,),
        in_specs=[pl.BlockSpec((num_graphs, F), lambda i: (0, 0)),
                  pl.BlockSpec((F, PD_pad), lambda i: (0, 0)),
                  pl.BlockSpec((1, PD_pad), lambda i: (0, 0))],
        out_specs=pl.BlockSpec((num_graphs, PD_pad), lambda i: (0, 0)),
    )(pooled, wt_p, bt_p)

    return prefix_flat[:, :PD].reshape(num_graphs, prefix_length, prefix_dim)


def reference(x, batch, params, num_graphs, prefix_length, prefix_dim):
    """Pure-JAX reference matching torch_geometric AttentionalAggregation + Linear."""
    w1, b1, w2, b2, wt, bt = params
    h = jnp.maximum(x @ w1 + b1, 0.0)
    gate = (h @ w2 + b2)[:, 0]                                   # [N]
    gmax = jax.ops.segment_max(gate, batch, num_segments=num_graphs)
    e = jnp.exp(gate - gmax[batch])
    denom = jax.ops.segment_sum(e, batch, num_segments=num_graphs)
    w = e / denom[batch]
    pooled = jax.ops.segment_sum(w[:, None] * x, batch, num_segments=num_graphs)
    prefix_flat = pooled @ wt + bt
    return prefix_flat.reshape(num_graphs, prefix_length, prefix_dim)


if __name__ == "__main__":
    # Small, module-consistent shapes.
    gnn_out_size = 32          # F
    hidden = gnn_out_size // 2 # gate_nn hidden
    prefix_length = 4          # P
    prefix_dim = 8             # D  (T5Config.d_model)
    num_graphs = 2             # B
    num_nodes = 8              # N

    key = jax.random.PRNGKey(0)
    k = jax.random.split(key, 8)

    x = jax.random.normal(k[0], (num_nodes, gnn_out_size), dtype=jnp.float32)
    # nodes 0..2 -> graph 0, nodes 3..7 -> graph 1 (sorted, torch_geometric style)
    batch = jnp.array([0, 0, 0, 1, 1, 1, 1, 1], dtype=jnp.int32)

    scale = 0.1
    w1 = scale * jax.random.normal(k[1], (gnn_out_size, hidden), dtype=jnp.float32)
    b1 = scale * jax.random.normal(k[2], (1, hidden), dtype=jnp.float32)
    w2 = scale * jax.random.normal(k[3], (hidden, 1), dtype=jnp.float32)
    b2 = scale * jax.random.normal(k[4], (1, 1), dtype=jnp.float32)
    wt = scale * jax.random.normal(k[5], (gnn_out_size, prefix_dim * prefix_length),
                                   dtype=jnp.float32)
    bt = scale * jax.random.normal(k[6], (1, prefix_dim * prefix_length),
                                   dtype=jnp.float32)
    params = (w1, b1, w2, b2, wt, bt)

    prefix = prefix_encoder(x, batch, params, num_graphs, prefix_length, prefix_dim)
    prefix = jax.block_until_ready(prefix)

    ref = reference(x, batch, params, num_graphs, prefix_length, prefix_dim)
    assert prefix.shape == (num_graphs, prefix_length, prefix_dim)
    assert jnp.allclose(prefix, ref, atol=1e-5, rtol=1e-5)

    print("KERNEL_OK")
</pallas_src>

<mosaic_0001>
module attributes {stable_mosaic.version = 11 : i64} {
  func.func @attn_pool_kernel(%arg0: i32, %arg1: memref<8x32xf32, #tpu.memory_space<vmem>>, %arg2: memref<1x8xi32, #tpu.memory_space<vmem>>, %arg3: memref<32x16xf32, #tpu.memory_space<vmem>>, %arg4: memref<1x16xf32, #tpu.memory_space<vmem>>, %arg5: memref<1x16xf32, #tpu.memory_space<vmem>>, %arg6: memref<2x32xf32, #tpu.memory_space<vmem>>, %arg7: memref<2x1xf32, #tpu.memory_space<vmem>>, %arg8: memref<2x1xf32, #tpu.memory_space<vmem>>, %arg9: memref<2x32xf32, #tpu.memory_space<vmem>>) attributes {dimension_semantics = [#tpu.dimension_semantics<arbitrary>], iteration_bounds = array<i64: 1>, scalar_prefetch = 0 : i64, scratch_operands = 3 : i64, tpu.core_type = #tpu.core_type<tc>, window_params = [{transform_indices = @transform_0, window_bounds = array<i64: 8, 32>}, {transform_indices = @transform_1, window_bounds = array<i64: 1, 8>}, {pipeline_mode = #tpu.pipeline_mode<synchronous>, transform_indices = @transform_2, window_bounds = array<i64: 32, 16>}, {pipeline_mode = #tpu.pipeline_mode<synchronous>, transform_indices = @transform_3, window_bounds = array<i64: 1, 16>}, {pipeline_mode = #tpu.pipeline_mode<synchronous>, transform_indices = @transform_4, window_bounds = array<i64: 1, 16>}, {pipeline_mode = #tpu.pipeline_mode<synchronous>, transform_indices = @transform_5, window_bounds = array<i64: 2, 32>}]} {
    %c0_i32 = arith.constant 0 : i32
    %0 = arith.cmpi eq, %arg0, %c0_i32 : i32
    %1 = arith.extui %0 : i1 to i32
    %c0_i32_0 = arith.constant 0 : i32
    %2 = arith.cmpi ne, %1, %c0_i32_0 : i32
    scf.if %2 {
      %cst_33 = arith.constant -1.000000e+30 : f32
      %62 = vector.broadcast %cst_33 : f32 to vector<2x1xf32>
      %c0_34 = arith.constant 0 : index
      %c0_35 = arith.constant 0 : index
      %63 = vector.load %arg7[%c0_34, %c0_35] : memref<2x1xf32, #tpu.memory_space<vmem>>, vector<2x1xf32>
      tpu.vector_store %arg7[%c0_34, %c0_35], %62 {strides = array<i32>} : memref<2x1xf32, #tpu.memory_space<vmem>>, vector<2x1xf32>,
      %cst_36 = arith.constant 0.000000e+00 : f32
      %64 = vector.broadcast %cst_36 : f32 to vector<2x1xf32>
      %c0_37 = arith.constant 0 : index
      %c0_38 = arith.constant 0 : index
      %65 = vector.load %arg8[%c0_37, %c0_38] : memref<2x1xf32, #tpu.memory_space<vmem>>, vector<2x1xf32>
      tpu.vector_store %arg8[%c0_37, %c0_38], %64 {strides = array<i32>} : memref<2x1xf32, #tpu.memory_space<vmem>>, vector<2x1xf32>,
      %cst_39 = arith.constant 0.000000e+00 : f32
      %66 = vector.broadcast %cst_39 : f32 to vector<2x32xf32>
      %c0_40 = arith.constant 0 : index
      %c0_41 = arith.constant 0 : index
      %67 = vector.load %arg9[%c0_40, %c0_41] : memref<2x32xf32, #tpu.memory_space<vmem>>, vector<2x32xf32>
      tpu.vector_store %arg9[%c0_40, %c0_41], %66 {strides = array<i32>} : memref<2x32xf32, #tpu.memory_space<vmem>>, vector<2x32xf32>,
    } else {
    }
    %c0 = arith.constant 0 : index
    %c0_1 = arith.constant 0 : index
    %3 = vector.load %arg1[%c0, %c0_1] : memref<8x32xf32, #tpu.memory_space<vmem>>, vector<8x32xf32>
    %c0_2 = arith.constant 0 : index
    %c0_3 = arith.constant 0 : index
    %4 = vector.load %arg3[%c0_2, %c0_3] : memref<32x16xf32, #tpu.memory_space<vmem>>, vector<32x16xf32>
    %cst = arith.constant dense<0.000000e+00> : vector<8x16xf32>
    %5 = tpu.matmul %3, %4, %cst {dimension_numbers = #tpu.dot_dimension_numbers<[1], [0], [0], [1], [0, 0, 1, 1], [], []>} : vector<8x32xf32>, vector<32x16xf32>, vector<8x16xf32> -> vector<8x16xf32>
    %c0_4 = arith.constant 0 : index
    %c0_5 = arith.constant 0 : index
    %6 = vector.load %arg4[%c0_4, %c0_5] : memref<1x16xf32, #tpu.memory_space<vmem>>, vector<1x16xf32>
    %7 = vector.broadcast %6 : vector<1x16xf32> to vector<8x16xf32>
    %8 = arith.addf %5, %7 : vector<8x16xf32>
    %cst_6 = arith.constant 0.000000e+00 : f32
    %9 = vector.broadcast %cst_6 : f32 to vector<8x16xf32>
    %10 = arith.maximumf %8, %9 : vector<8x16xf32>
    %c0_7 = arith.constant 0 : index
    %c0_8 = arith.constant 0 : index
    %11 = vector.load %arg5[%c0_7, %c0_8] : memref<1x16xf32, #tpu.memory_space<vmem>>, vector<1x16xf32>
    %12 = vector.broadcast %11 : vector<1x16xf32> to vector<8x16xf32>
    %13 = arith.mulf %10, %12 : vector<8x16xf32>
    %cst_9 = arith.constant dense<0.000000e+00> : vector<8xf32>
    %14 = vector.multi_reduction <add>, %13, %cst_9 [1] : vector<8x16xf32> to vector<8xf32>
    %15 = vector.shape_cast %14 : vector<8xf32> to vector<8x1xf32>
    %16 = tpu.transpose %15, [1, 0] : vector<8x1xf32> -> vector<1x8xf32>
    %c0_10 = arith.constant 0 : index
    %c0_11 = arith.constant 0 : index
    %17 = vector.load %arg2[%c0_10, %c0_11] : memref<1x8xi32, #tpu.memory_space<vmem>>, vector<1x8xi32>
    %18 = tpu.iota {dimensions = array<i32: 0>} : vector<2x8xi32>
    %19 = vector.broadcast %17 : vector<1x8xi32> to vector<2x8xi32>
    %20 = arith.cmpi eq, %19, %18 : vector<2x8xi32>
    %cst_12 = arith.constant -1.000000e+30 : f32
    %21 = vector.shape_cast %16 : vector<1x8xf32> to vector<1x8xf32>
    %22 = vector.broadcast %21 : vector<1x8xf32> to vector<2x8xf32>
    %23 = vector.broadcast %cst_12 : f32 to vector<2x8xf32>
    %24 = arith.select %20, %22, %23 : vector<2x8xi1>, vector<2x8xf32>
    %cst_13 = arith.constant dense<0xFF800000> : vector<2xf32>
    %25 = vector.multi_reduction <maximumf>, %24, %cst_13 [1] : vector<2x8xf32> to vector<2xf32>
    %26 = vector.shape_cast %25 : vector<2xf32> to vector<2x1xf32>
    %c0_14 = arith.constant 0 : index
    %c0_15 = arith.constant 0 : index
    %27 = vector.load %arg7[%c0_14, %c0_15] : memref<2x1xf32, #tpu.memory_space<vmem>>, vector<2x1xf32>
    %28 = arith.maximumf %27, %26 : vector<2x1xf32>
    %29 = arith.subf %27, %28 : vector<2x1xf32>
    %30 = math.exp %29 : vector<2x1xf32>
    %cst_16 = arith.constant dense<0xFF800000> : vector<1xf32>
    %31 = vector.multi_reduction <maximumf>, %16, %cst_16 [1] : vector<1x8xf32> to vector<1xf32>
    %32 = vector.shape_cast %31 : vector<1xf32> to vector<1x1xf32>
    %33 = vector.broadcast %32 : vector<1x1xf32> to vector<1x8xf32>
    %34 = arith.subf %16, %33 : vector<1x8xf32>
    %35 = math.exp %34 : vector<1x8xf32>
    %36 = vector.broadcast %32 : vector<1x1xf32> to vector<2x1xf32>
    %37 = arith.subf %36, %28 : vector<2x1xf32>
    %cst_17 = arith.constant 8.000000e+01 : f32
    %38 = vector.broadcast %cst_17 : f32 to vector<2x1xf32>
    %39 = arith.minimumf %37, %38 : vector<2x1xf32>
    %40 = math.exp %39 : vector<2x1xf32>
    %41 = vector.broadcast %35 : vector<1x8xf32> to vector<2x8xf32>
    %42 = vector.broadcast %40 : vector<2x1xf32> to vector<2x8xf32>
    %43 = arith.mulf %41, %42 : vector<2x8xf32>
    %cst_18 = arith.constant 0.000000e+00 : f32
    %44 = vector.broadcast %cst_18 : f32 to vector<2x8xf32>
    %45 = arith.select %20, %43, %44 : vector<2x8xi1>, vector<2x8xf32>
    %c0_19 = arith.constant 0 : index
    %c0_20 = arith.constant 0 : index
    %46 = vector.load %arg8[%c0_19, %c0_20] : memref<2x1xf32, #tpu.memory_space<vmem>>, vector<2x1xf32>
    %47 = arith.mulf %30, %46 : vector<2x1xf32>
    %cst_21 = arith.constant dense<0.000000e+00> : vector<2xf32>
    %48 = vector.multi_reduction <add>, %45, %cst_21 [1] : vector<2x8xf32> to vector<2xf32>
    %49 = vector.shape_cast %48 : vector<2xf32> to vector<2x1xf32>
    %50 = arith.addf %47, %49 : vector<2x1xf32>
    %c0_22 = arith.constant 0 : index
    %c0_23 = arith.constant 0 : index
    %51 = vector.load %arg8[%c0_22, %c0_23] : memref<2x1xf32, #tpu.memory_space<vmem>>, vector<2x1xf32>
    tpu.vector_store %arg8[%c0_22, %c0_23], %50 {strides = array<i32>} : memref<2x1xf32, #tpu.memory_space<vmem>>, vector<2x1xf32>,
    %c0_24 = arith.constant 0 : index
    %c0_25 = arith.constant 0 : index
    %52 = vector.load %arg9[%c0_24, %c0_25] : memref<2x32xf32, #tpu.memory_space<vmem>>, vector<2x32xf32>
    %53 = vector.broadcast %30 : vector<2x1xf32> to vector<2x32xf32>
    %54 = arith.mulf %53, %52 : vector<2x32xf32>
    %cst_26 = arith.constant dense<0.000000e+00> : vector<2x32xf32>
    %55 = tpu.matmul %45, %3, %cst_26 {dimension_numbers = #tpu.dot_dimension_numbers<[1], [0], [0], [1], [0, 0, 1, 1], [], []>} : vector<2x8xf32>, vector<8x32xf32>, vector<2x32xf32> -> vector<2x32xf32>
    %56 = arith.addf %54, %55 : vector<2x32xf32>
    %c0_27 = arith.constant 0 : index
    %c0_28 = arith.constant 0 : index
    %57 = vector.load %arg9[%c0_27, %c0_28] : memref<2x32xf32, #tpu.memory_space<vmem>>, vector<2x32xf32>
    tpu.vector_store %arg9[%c0_27, %c0_28], %56 {strides = array<i32>} : memref<2x32xf32, #tpu.memory_space<vmem>>, vector<2x32xf32>,
    %c0_29 = arith.constant 0 : index
    %c0_30 = arith.constant 0 : index
    %58 = vector.load %arg7[%c0_29, %c0_30] : memref<2x1xf32, #tpu.memory_space<vmem>>, vector<2x1xf32>
    tpu.vector_store %arg7[%c0_29, %c0_30], %28 {strides = array<i32>} : memref<2x1xf32, #tpu.memory_space<vmem>>, vector<2x1xf32>,
    %c0_i32_31 = arith.constant 0 : i32
    %59 = arith.cmpi eq, %arg0, %c0_i32_31 : i32
    %60 = arith.extui %59 : i1 to i32
    %c0_i32_32 = arith.constant 0 : i32
    %61 = arith.cmpi ne, %60, %c0_i32_32 : i32
    scf.if %61 {
      %c0_33 = arith.constant 0 : index
      %c0_34 = arith.constant 0 : index
      %62 = vector.load %arg8[%c0_33, %c0_34] : memref<2x1xf32, #tpu.memory_space<vmem>>, vector<2x1xf32>
      %cst_35 = arith.constant 1.000000e-30 : f32
      %63 = vector.broadcast %cst_35 : f32 to vector<2x1xf32>
      %64 = arith.maximumf %62, %63 : vector<2x1xf32>
      %c0_36 = arith.constant 0 : index
      %c0_37 = arith.constant 0 : index
      %65 = vector.load %arg9[%c0_36, %c0_37] : memref<2x32xf32, #tpu.memory_space<vmem>>, vector<2x32xf32>
      %66 = tpu.reciprocal %64 : vector<2x1xf32> -> vector<2x1xf32>
      %67 = vector.broadcast %66 : vector<2x1xf32> to vector<2x32xf32>
      %68 = arith.mulf %65, %67 : vector<2x32xf32>
      %c0_38 = arith.constant 0 : index
      %c0_39 = arith.constant 0 : index
      %69 = vector.load %arg6[%c0_38, %c0_39] : memref<2x32xf32, #tpu.memory_space<vmem>>, vector<2x32xf32>
      tpu.vector_store %arg6[%c0_38, %c0_39], %68 {strides = array<i32>} : memref<2x32xf32, #tpu.memory_space<vmem>>, vector<2x32xf32>,
    } else {
    }
    return
  }
  func.func @transform_0(%arg0: i32) -> (i32, i32) {
    %c0_i32 = arith.constant 0 : i32
    %c0_i32_0 = arith.constant 0 : i32
    return %arg0, %c0_i32 : i32, i32
  }
  func.func @transform_1(%arg0: i32) -> (i32, i32) {
    %c0_i32 = arith.constant 0 : i32
    %c0_i32_0 = arith.constant 0 : i32
    return %c0_i32, %arg0 : i32, i32
  }
  func.func @transform_2(%arg0: i32) -> (i32, i32) {
    %c0_i32 = arith.constant 0 : i32
    %c0_i32_0 = arith.constant 0 : i32
    %c0_i32_1 = arith.constant 0 : i32
    return %c0_i32, %c0_i32_0 : i32, i32
  }
  func.func @transform_3(%arg0: i32) -> (i32, i32) {
    %c0_i32 = arith.constant 0 : i32
    %c0_i32_0 = arith.constant 0 : i32
    %c0_i32_1 = arith.constant 0 : i32
    return %c0_i32, %c0_i32_0 : i32, i32
  }
  func.func @transform_4(%arg0: i32) -> (i32, i32) {
    %c0_i32 = arith.constant 0 : i32
    %c0_i32_0 = arith.constant 0 : i32
    %c0_i32_1 = arith.constant 0 : i32
    return %c0_i32, %c0_i32_0 : i32, i32
  }
  func.func @transform_5(%arg0: i32) -> (i32, i32) {
    %c0_i32 = arith.constant 0 : i32
    %c0_i32_0 = arith.constant 0 : i32
    %c0_i32_1 = arith.constant 0 : i32
    return %c0_i32, %c0_i32_0 : i32, i32
  }
}

</mosaic_0001>

<llo_original>
// kernel: tpu_custom_call.1
$region0: #{tpu_custom_call.1}
  #allocation0 [shape = 'u32[]', space=smem, size = 0x4, offset = 0x4, fixed_abs, tag = 'smem constant byte address 0x4 - core index']
  #allocation1 [shape = 'u32[144,128]{1,0:T(1,128)}', space=vmem, size = 0x12000, scoped, tag = 'internal scratch']
  #allocation2 [shape = 'f32[2,1]{1,0:T(2,128)}', space=vmem, size = 0x400, scoped, tag = 'scratch operand']
  #allocation3 [shape = 'f32[2,1]{1,0:T(2,128)}', space=vmem, size = 0x400, scoped, tag = 'scratch operand']
  #allocation4 [shape = 'f32[2,32]{1,0:T(2,128)}', space=vmem, size = 0x400, scoped, tag = 'scratch operand']
  %s0 = inlined_call_operand.vmem [shape: f32[8,32], index: 0, kind: input, shape index: {}]
  %s1 = inlined_call_operand.vmem [shape: s32[1,8], index: 1, kind: input, shape index: {}]
  %s2 = inlined_call_operand.vmem [shape: f32[32,16], index: 2, kind: input, shape index: {}]
  %s3 = inlined_call_operand.vmem [shape: f32[1,16], index: 3, kind: input, shape index: {}]
  %s4 = inlined_call_operand.vmem [shape: f32[1,16], index: 4, kind: input, shape index: {}]
  %s5 = inlined_call_operand.hbm [shape: f32[2,32], index: 5, kind: output, shape index: {}]
  %s6 = sld [smem:[#allocation0]]
  $region38: #{tpu_custom_call.1} parent=0
    _
  %s8 = ssub.s32 1, %s6
  %s9 = scalar_select 0, %s8, %s6
  $region1: #{tpu_custom_call.1} parent=0
    #allocation5 [shape = 'u8[1024]{0}', space=vmem, size = 0x400, scoped, tag = 'output window, operand 0, single buffered']
    #allocation6 [shape = 's32[1]{0}', space=sflag, size = 0x4, scoped, tag = 'scoped memory for tpu_custom_call.1']
    %10 = vsyncpa [#allocation6], 0
    // Predicated region
    $region2: #{tpu_custom_call.1} parent=1 // pred_check
      _
    $region3: #{tpu_custom_call.1} parent=1 // pred_check_branch
      %12 = sbr.rel (0) target = $region5
    $region4: #{tpu_custom_call.1} parent=1 // pred_region
      _
    $region5: #{tpu_custom_call.1} parent=1 // pred_fallthru
      _
    // Predicated region
    $region6: #{tpu_custom_call.1} parent=1 // pred_check
      _
    $region7: #{tpu_custom_call.1} parent=1 // pred_check_branch
      %14 = sbr.rel (0) target = $region9
    $region8: #{tpu_custom_call.1} parent=1 // pred_region
      _
    $region9: #{tpu_custom_call.1} parent=1 // pred_fallthru
      _
    // Predicated region
    $region10: #{tpu_custom_call.1} parent=1 // pred_check
      _
    $region11: #{tpu_custom_call.1} parent=1 // pred_check_branch
      %16 = sbr.rel (0) target = $region13
    $region12: #{tpu_custom_call.1} parent=1 // pred_region
      _
    $region13: #{tpu_custom_call.1} parent=1 // pred_fallthru
      _
    // Predicated region
    $region14: #{tpu_custom_call.1} parent=1 // pred_check
      _
    $region15: #{tpu_custom_call.1} parent=1 // pred_check_branch
      %18 = sbr.rel (0) target = $region17
    $region16: #{tpu_custom_call.1} parent=1 // pred_region
      _
    $region17: #{tpu_custom_call.1} parent=1 // pred_fallthru
      _
    // Predicated region
    $region18: #{tpu_custom_call.1} parent=1 // pred_check
      _
    $region19: #{tpu_custom_call.1} parent=1 // pred_check_branch
      %20 = sbr.rel (0) target = $region21
    $region20: #{tpu_custom_call.1} parent=1 // pred_region
      _
    $region21: #{tpu_custom_call.1} parent=1 // pred_fallthru
      _
    %p21 = scmp.eq.s32.totalorder 0, 0
    // Predicated region
    $region22: #{tpu_custom_call.1} parent=1 // pred_check
      %p22 = pneg %p21
    $region23: #{tpu_custom_call.1} parent=1 // pred_check_branch
      %24 = sbr.rel (%p22) target = $region25
    $region24: #{tpu_custom_call.1} parent=1 // pred_region
      %vm25 = vcmask 1024
      %26 = vst.msk [vmem:[#allocation2] sm:$0x3] %vm25, -1e+30
      %27 = vst.msk [vmem:[#allocation3] sm:$0x3] %vm25, 0.0
      %vm28 = vcmask 254976
      %29 = vst.msk [vmem:[#allocation4] sm:$0x3] %vm28, 0.0
    $region25: #{tpu_custom_call.1} parent=1 // pred_fallthru
      _
    %v30 = vld [vmem:[%s0] sm:$0xff]
    %v31 = vld [vmem:[%s2] sm:$0xff]
    %v32 = vld [vmem:[%s2 + $0x8] sm:$0xff]
    %v33 = vld [vmem:[%s2 + $0x10] sm:$0xff]
    %v34 = vld [vmem:[%s2 + $0x18] sm:$0xff]
    %v35 = vld [vmem:[%s3] sm:$0x1]
    %v37 = vlaneseq
    %v38 = vshrl.u32 %v37, 7
    %v39 = vsub.s32 0, %v38
    %v40 = vrot.slane %v35, %v39
    %vm42 = vcmask 261120
    %v44 = vsel %vm42, %v30, 0
    %46 = vmatprep.subr.mxu0 0.0
    %47 = vmatpush1.msra.mxu0 %v31
    %48 = vmatprep.subr.mxu0 0.0
    %49 = vmatpush1.msra.mxu0 %v32
    %50 = vmatprep.subr.mxu0 0.0
    %51 = vmatpush1.msra.mxu0 %v33
    %52 = vmatprep.subr.mxu0 0.0
    %53 = vmatpush1.msra.mxu0 %v34
    %54 = vmatprep.subr.mxu0 0.0
    %55 = vmatpush1.msra.mxu0 0.0
    %56 = vmatprep.subr.mxu0 0.0
    %57 = vmatpush1.msra.mxu0 0.0
    %58 = vmatprep.subr.mxu0 0.0
    %59 = vmatpush1.msra.mxu0 0.0
    %60 = vmatprep.subr.mxu0 0.0
    %61 = vmatpush1.msra.mxu0 0.0
    %62 = vmatprep.subr.mxu0 0.0
    %63 = vmatpush1.msra.mxu0 0.0
    %64 = vmatprep.subr.mxu0 0.0
    %65 = vmatpush1.msra.mxu0 0.0
    %66 = vmatprep.subr.mxu0 0.0
    %67 = vmatpush1.msra.mxu0 0.0
    %68 = vmatprep.subr.mxu0 0.0
    %69 = vmatpush1.msra.mxu0 0.0
    %70 = vmatprep.subr.mxu0 0.0
    %71 = vmatpush1.msra.mxu0 0.0
    %72 = vmatprep.subr.mxu0 0.0
    %73 = vmatpush1.msra.mxu0 0.0
    %74 = vmatprep.subr.mxu0 0.0
    %75 = vmatpush1.msra.mxu0 0.0
    %76 = vmatprep.subr.mxu0 0.0
    %77 = vmatpush1.msra.mxu0 0.0
    %78 = vmatprep.subr.mxu0 0.0
    %79 = vmatpush1.msra.mxu0 0.0
    %80 = vmatprep.subr.mxu0 0.0
    %81 = vmatpush1.msra.mxu0 0.0
    %82 = vmatprep.subr.mxu0 0.0
    %83 = vmatpush1.msra.mxu0 0.0
    %84 = vmatprep.subr.mxu0 0.0
    %85 = vmatpush1.msra.mxu0 0.0
    %86 = vmatprep.subr.mxu0 0.0
    %87 = vmatpush1.msra.mxu0 0.0
    %88 = vmatprep.subr.mxu0 0.0
    %89 = vmatpush1.msra.mxu0 0.0
    %90 = vmatprep.subr.mxu0 0.0
    %91 = vmatpush1.msra.mxu0 0.0
    %92 = vmatprep.subr.mxu0 0.0
    %93 = vmatpush1.msra.mxu0 0.0
    %94 = vmatprep.subr.mxu0 0.0
    %95 = vmatpush1.msra.mxu0 0.0
    %96 = vmatprep.subr.mxu0 0.0
    %97 = vmatpush1.msra.mxu0 0.0
    %98 = vmatprep.subr.mxu0 0.0
    %99 = vmatpush1.msra.mxu0 0.0
    %100 = vmatprep.subr.mxu0 0.0
    %101 = vmatpush1.msra.mxu0 0.0
    %102 = vmatprep.subr.mxu0 0.0
    %103 = vmatpush1.msra.mxu0 0.0
    %104 = vmatprep.subr.mxu0 0.0
    %105 = vmatpush1.msra.mxu0 0.0
    %106 = vmatprep.subr.mxu0 0.0
    %107 = vmatpush1.msra.mxu0 0.0
    %108 = vmatprep.subr.mxu0 0.0
    %109 = vmatpush1.msra.mxu0 0.0
    %110 = vmatprep.mubr.f32.mxu0 0.0
    %111 = vmatmul.mubr.f32.gmra.mrb[0].mxu0 %v44
    %v112 = vpop.f32.mrb[0].mxu0
    %v113 = vadd.f32 %v40, %v112
    %v114 = vpop.f32.mrb[0].mxu0
    %115 = vdwg.mxu0
    %v116 = vmax.f32 %v113, 0.0
    %v117 = vld [vmem:[%s4] sm:$0x1]
    %v119 = vlaneseq
    %v120 = vshrl.u32 %v119, 7
    %v121 = vsub.s32 0, %v120
    %v122 = vrot.slane %v117, %v121
    %v124 = vmul.f32 %v116, %v122
    %vm125 = vcmask 130048
    %v126 = vsel %vm125, %v124, 0.0
    %127 = vadd.xlane.f32.xlu0 %v126
    %v128 = vpop.xlane.xlu0 %127
    %129 = vxpose.xlu0.b32.start [1/16] %v128, 128
    %130 = vxpose.xlu0.b32.cont [2/16] 0.0, 128
    %131 = vxpose.xlu0.b32.cont [3/16] 0.0, 128
    %132 = vxpose.xlu0.b32.cont [4/16] 0.0, 128
    %133 = vxpose.xlu0.b32.cont [5/16] 0.0, 128
    %134 = vxpose.xlu0.b32.cont [6/16] 0.0, 128
    %135 = vxpose.xlu0.b32.cont [7/16] 0.0, 128
    %136 = vxpose.xlu0.b32.cont [8/16] 0.0, 128
    %137 = vxpose.xlu0.b32.cont [9/16] 0.0, 128
    %138 = vxpose.xlu0.b32.cont [10/16] 0.0, 128
    %139 = vxpose.xlu0.b32.cont [11/16] 0.0, 128
    %140 = vxpose.xlu0.b32.cont [12/16] 0.0, 128
    %141 = vxpose.xlu0.b32.cont [13/16] 0.0, 128
    %142 = vxpose.xlu0.b32.cont [14/16] 0.0, 128
    %143 = vxpose.xlu0.b32.cont [15/16] 0.0, 128
    %144 = vxpose.xlu0.b32.end [16/16] 0.0, 128
    %v145 = vpop.trf.xlu0
    %v146 = vpop.trf.xlu0
    %v147 = vpop.trf.xlu0
    %v148 = vpop.trf.xlu0
    %v149 = vpop.trf.xlu0
    %v150 = vpop.trf.xlu0
    %v151 = vpop.trf.xlu0
    %v152 = vpop.trf.xlu0
    %v153 = vpop.trf.xlu0
    %v154 = vpop.trf.xlu0
    %v155 = vpop.trf.xlu0
    %v156 = vpop.trf.xlu0
    %v157 = vpop.trf.xlu0
    %v158 = vpop.trf.xlu0
    %v159 = vpop.trf.xlu0
    %v160 = vpop.trf.xlu0
    %v161 = vld [vmem:[%s1] sm:$0x1]
    %v162 = vlaneseq
    %v163 = vshrl.u32 %v162, 7
    %v164 = vlaneseq
    %v165 = vshrl.u32 %v164, 7
    %v166 = vsub.s32 0, %v165
    %v167 = vrot.slane %v161, %v166
    %vm168 = vcmp.eq.s32.totalorder %v167, %v163
    %v169 = vlaneseq
    %v170 = vshrl.u32 %v169, 7
    %v171 = vsub.s32 0, %v170
    %v172 = vrot.slane %v145, %v171
    %v173 = vsel %vm168, %v172, -1e+30
    %vm174 = vcmask 58368
    %v175 = vsel %vm174, %v173, -inf
    %176 = vmax.xlane.f32.xlu0 %v175
    %v177 = vpop.xlane.xlu0 %176
    %v178 = vld [vmem:[#allocation2] sm:$0x3]
    %v179 = vmax.f32 %v178, %v177
    %v180 = vsub.f32 %v178, %v179
    %v181 = vmul.f32 %v180, 1.442695
    %v182 = vpow.pop %v181
    %vm183 = vcmask 57344
    %v184 = vsel %vm183, %v145, -inf
    %185 = vmax.xlane.f32.xlu0 %v184
    %v186 = vpop.xlane.xlu0 %185
    %v187 = vsub.f32 %v145, %v186
    %v188 = vmul.f32 %v187, 1.442695
    %v189 = vpow.pop %v188
    %v190 = vlaneseq
    %v191 = vshrl.u32 %v190, 7
    %v192 = vsub.s32 0, %v191
    %v193 = vrot.slane %v186, %v192
    %v194 = vsub.f32 %v193, %v179
    %v195 = vmin.f32 %v194, 80.0
    %v196 = vmul.f32 %v195, 1.442695
    %v197 = vpow.pop %v196
    %v198 = vlaneseq
    %v199 = vshrl.u32 %v198, 7
    %v200 = vsub.s32 0, %v199
    %v201 = vrot.slane %v189, %v200
    %203 = vset.pattern.permute.xlu0 0
    %204 = vperm.xlu0 %203, %v197
    %v205 = vpop.permute.xlu0 %204
    %v207 = vmul.f32 %v201, %v205
    %v208 = vsel %vm168, %v207, 0.0
    %v209 = vld [vmem:[#allocation3] sm:$0x3]
    %v210 = vmul.f32 %v182, %v209
    %v211 = vsel %vm174, %v208, 0.0
    %212 = vadd.xlane.f32.xlu0 %v211
    %v213 = vpop.xlane.xlu0 %212
    %v214 = vadd.f32 %v210, %v213
    %vm215 = vcmask 1024
    %216 = vst.msk [vmem:[#allocation3] sm:$0x3] %vm215, %v214
    %v217 = vld [vmem:[#allocation4] sm:$0x3]
    %219 = vset.pattern.permute.xlu0 0
    %220 = vperm.xlu0 %219, %v182
    %v221 = vpop.permute.xlu0 %220
    %v223 = vmul.f32 %v221, %v217
    %vm224 = vcmask 64512
    %v226 = vsel %vm224, %v208, 0
    %228 = vmatprep.subr.mxu0 0.0
    %229 = vmatpush1.msra.mxu0 %v30
    %230 = vmatprep.subr.mxu0 0.0
    %231 = vmatpush1.msra.mxu0 0.0
    %232 = vmatprep.subr.mxu0 0.0
    %233 = vmatpush1.msra.mxu0 0.0
    %234 = vmatprep.subr.mxu0 0.0
    %235 = vmatpush1.msra.mxu0 0.0
    %236 = vmatprep.subr.mxu0 0.0
    %237 = vmatpush1.msra.mxu0 0.0
    %238 = vmatprep.subr.mxu0 0.0
    %239 = vmatpush1.msra.mxu0 0.0
    %240 = vmatprep.subr.mxu0 0.0
    %241 = vmatpush1.msra.mxu0 0.0
    %242 = vmatprep.subr.mxu0 0.0
    %243 = vmatpush1.msra.mxu0 0.0
    %244 = vmatprep.subr.mxu0 0.0
    %245 = vmatpush1.msra.mxu0 0.0
    %246 = vmatprep.subr.mxu0 0.0
    %247 = vmatpush1.msra.mxu0 0.0
    %248 = vmatprep.subr.mxu0 0.0
    %249 = vmatpush1.msra.mxu0 0.0
    %250 = vmatprep.subr.mxu0 0.0
    %251 = vmatpush1.msra.mxu0 0.0
    %252 = vmatprep.subr.mxu0 0.0
    %253 = vmatpush1.msra.mxu0 0.0
    %254 = vmatprep.subr.mxu0 0.0
    %255 = vmatpush1.msra.mxu0 0.0
    %256 = vmatprep.subr.mxu0 0.0
    %257 = vmatpush1.msra.mxu0 0.0
    %258 = vmatprep.subr.mxu0 0.0
    %259 = vmatpush1.msra.mxu0 0.0
    %260 = vmatprep.subr.mxu0 0.0
    %261 = vmatpush1.msra.mxu0 0.0
    %262 = vmatprep.subr.mxu0 0.0
    %263 = vmatpush1.msra.mxu0 0.0
    %264 = vmatprep.subr.mxu0 0.0
    %265 = vmatpush1.msra.mxu0 0.0
    %266 = vmatprep.subr.mxu0 0.0
    %267 = vmatpush1.msra.mxu0 0.0
    %268 = vmatprep.subr.mxu0 0.0
    %269 = vmatpush1.msra.mxu0 0.0
    %270 = vmatprep.subr.mxu0 0.0
    %271 = vmatpush1.msra.mxu0 0.0
    %272 = vmatprep.subr.mxu0 0.0
    %273 = vmatpush1.msra.mxu0 0.0
    %274 = vmatprep.subr.mxu0 0.0
    %275 = vmatpush1.msra.mxu0 0.0
    %276 = vmatprep.subr.mxu0 0.0
    %277 = vmatpush1.msra.mxu0 0.0
    %278 = vmatprep.subr.mxu0 0.0
    %279 = vmatpush1.msra.mxu0 0.0
    %280 = vmatprep.subr.mxu0 0.0
    %281 = vmatpush1.msra.mxu0 0.0
    %282 = vmatprep.subr.mxu0 0.0
    %283 = vmatpush1.msra.mxu0 0.0
    %284 = vmatprep.subr.mxu0 0.0
    %285 = vmatpush1.msra.mxu0 0.0
    %286 = vmatprep.subr.mxu0 0.0
    %287 = vmatpush1.msra.mxu0 0.0
    %288 = vmatprep.subr.mxu0 0.0
    %289 = vmatpush1.msra.mxu0 0.0
    %290 = vmatprep.subr.mxu0 0.0
    %291 = vmatpush1.msra.mxu0 0.0
    %292 = vmatprep.mubr.f32.mxu0 0.0
    %293 = vmatmul.mubr.f32.gmra.mrb[0].mxu0 %v226
    %v294 = vpop.f32.mrb[0].mxu0
    %v295 = vadd.f32 0.0, %v294
    %v296 = vpop.f32.mrb[0].mxu0
    %297 = vdwg.mxu0
    %v298 = vadd.f32 %v223, %v295
    %vm299 = vcmask 254976
    %300 = vst.msk [vmem:[#allocation4] sm:$0x3] %vm299, %v298
    %301 = vst.msk [vmem:[#allocation2] sm:$0x3] %vm215, %v179
    // Predicated region
    $region26: #{tpu_custom_call.1} parent=1 // pred_check
      %p302 = pneg %p21
    $region27: #{tpu_custom_call.1} parent=1 // pred_check_branch
      %304 = sbr.rel (%p302) target = $region29
    $region28: #{tpu_custom_call.1} parent=1 // pred_region
      %v305 = vld [vmem:[#allocation3] sm:$0x3]
      %v306 = vmax.f32 %v305, 1e-30
      %v307 = vld [vmem:[#allocation4] sm:$0x3]
      %v308 = vrcp.pop %v306
      %310 = vset.pattern.permute.xlu0 0
      %311 = vperm.xlu0 %310, %v308
      %v312 = vpop.permute.xlu0 %311
      %v314 = vmul.f32 %v307, %v312
      %315 = vst.msk [vmem:[#allocation5] sm:$0x3] %vm299, %v314
    $region29: #{tpu_custom_call.1} parent=1 // pred_fallthru
      _
    // Predicated region
    $region30: #{tpu_custom_call.1} parent=1 // pred_check
      _
    $region31: #{tpu_custom_call.1} parent=1 // pred_check_branch
      %317 = sbr.rel (0) target = $region33
    $region32: #{tpu_custom_call.1} parent=1 // pred_region
      %s319 = ssub.s32 32, 32
      %320 = vsyncadd [#allocation6], %s319
      %s322 = sshll.u32 [#allocation5], 4
      %s323 = int_to_ptr.vmem [resolvable:$true] %s322
      %325 = dma.vmem_to_hbm [thread:$0]  %s323, 32, %s5, [#allocation6]
    $region33: #{tpu_custom_call.1} parent=1 // pred_fallthru
      _
    // Predicated region
    $region34: #{tpu_custom_call.1} parent=1 // pred_check
      _
    $region35: #{tpu_custom_call.1} parent=1 // pred_check_branch
      %327 = sbr.rel (0) target = $region37
    $region36: #{tpu_custom_call.1} parent=1 // pred_region
      %328 = dma.done [#allocation6], 32
    $region37: #{tpu_custom_call.1} parent=1 // pred_fallthru
      _
    %329 = vsyncpa [#allocation6], 1

</llo_original>
